<compile_context>
chip_gen: v5e
topology: v5e:2x2
jax: 0.10.0
libtpu: 0.0.40
codegen_flags: <defaults>
</compile_context>

<pallas_src>
import jax
import jax.numpy as jnp
from jax.experimental import pallas as pl
from jax.experimental.pallas import tpu as pltpu


def _cdiv(a, b):
    return (a + b - 1) // b


def _round_up(x, m):
    return ((x + m - 1) // m) * m


def _choose_batch_tile(B, block_b):
    """Batch tile (lane) width: multiple of 128, <= block_b, waste <= 127/tile."""
    block_b = max(128, (int(block_b) // 128) * 128)   # robustness: multiple of 128
    n = _cdiv(B, block_b)
    if B > 1024:
        # At least two (and an even number of) grid steps so the "parallel"
        # batch axis can shard across both v7x TensorCores.
        n = max(2, n + (n % 2))
    return min(block_b, _round_up(_cdiv(B, n), 128))


def _vmem_limit_bytes(E, H, TB):
    # Double-buffered input streams + compiler-materialized (H, TB) temps +
    # double-buffered (sublane-padded) output tile, with ~2x slack.  Floor at
    # the conservative 16 MiB default; cap below v7x's 64 MiB physical VMEM.
    stream = 2 * 2 * E * TB * 4          # z1^T, z2^T, 2 pipeline buffers each
    temps = 4 * H * TB * 4               # h1/h2/dot intermediates
    outb = 2 * 8 * TB * 4                # (1, TB) out tile, sublane-padded, 2 bufs
    need = 2 * (stream + temps + outb) + (1 << 20)
    return int(min(40 << 20, max(16 << 20, need)))


def pen_kernel(z1t_ref, z2t_ref, w1a_ref, w1b_ref, b1_ref, w2_ref, b2_ref,
               w3t_ref, b3_ref, out_ref):
    # Layer 1, split over the fused concat: (H,E)@(E,TB) + (H,E)@(E,TB).
    a1 = (jnp.dot(w1a_ref[...], z1t_ref[...], preferred_element_type=jnp.float32)
          + jnp.dot(w1b_ref[...], z2t_ref[...], preferred_element_type=jnp.float32)
          + b1_ref[...])
    h1 = jnp.tanh(a1)

    # Layer 2: (H, H) @ (H, TB) -> (H, TB); bias (H, 1) broadcasts over lanes.
    h2 = jnp.tanh(
        jnp.dot(w2_ref[...], h1, preferred_element_type=jnp.float32) + b2_ref[...])

    # Output layer (width 1): VPU multiply + sublane reduce instead of a
    # degenerate N=1 MXU matmul.  b3 is a single SMEM scalar.
    out = jnp.sum(w3t_ref[...] * h2, axis=0, keepdims=True) + b3_ref[0, 0]
    out_ref[...] = out.astype(out_ref.dtype)


def pen_forward_t(z1t, z2t, params, *, block_b=16384):
    """Preferred zero-copy entry: z1t, z2t already transposed, shape (E, B)."""
    w1, b1, w2, b2, w3t, b3 = params
    E, B = z1t.shape
    H = w2.shape[0]
    w1a, w1b = w1[:, :E], w1[:, E:]      # tiny (H, E) halves of the fused W1

    TB = _choose_batch_tile(B, block_b)
    grid = (_cdiv(B, TB),)               # partial last tile is masked by Pallas

    def resident(shape):
        # Constant index_map -> weights/biases stay VMEM-resident across steps.
        return pl.BlockSpec(shape, lambda i: (0, 0))

    outT = pl.pallas_call(
        pen_kernel,
        out_shape=jax.ShapeDtypeStruct((1, B), jnp.float32),
        grid=grid,
        in_specs=[
            pl.BlockSpec((E, TB), lambda i: (0, i)),            # z1^T batch tile
            pl.BlockSpec((E, TB), lambda i: (0, i)),            # z2^T batch tile
            resident((H, E)),                                   # W1[:, :E]
            resident((H, E)),                                   # W1[:, E:]
            resident((H, 1)),                                   # b1
            resident((H, H)),                                   # W2
            resident((H, 1)),                                   # b2
            resident((H, 1)),                                   # W3^T
            pl.BlockSpec(memory_space=pltpu.MemorySpace.SMEM),  # b3 scalar
        ],
        out_specs=pl.BlockSpec((1, TB), lambda i: (0, i)),
        compiler_params=pltpu.CompilerParams(
            dimension_semantics=("parallel",),
            vmem_limit_bytes=_vmem_limit_bytes(E, H, TB)),
    )(z1t, z2t, w1a, w1b, b1, w2, b2, w3t, b3)

    return outT.T                                               # (B, 1)


def pen_forward(z1, z2, params, *, block_b=16384):
    """Module-compatible entry: z1, z2 are (B, E) as in the PyTorch forward().

    The two transposes below are the only remaining layout copies; producers
    that can emit (E, B) directly should call pen_forward_t and skip them.
    """
    return pen_forward_t(z1.T, z2.T, params, block_b=block_b)


def xavier_normal(key, shape_out_in):
    """torch.nn.init.xavier_normal_ on a (out_features, in_features) weight."""
    fan_out, fan_in = shape_out_in
    std = (2.0 / (fan_in + fan_out)) ** 0.5
    return std * jax.random.normal(key, shape_out_in, dtype=jnp.float32)


def init_params(key, embedding_size, pen_hidden):
    k1, k2, k3, kb1, kb2, kb3 = jax.random.split(key, 6)
    in1 = 2 * embedding_size
    H = pen_hidden
    # PyTorch Linear layout (out_features, in_features) — used directly,
    # since the kernel computes W @ x^T.
    w1 = xavier_normal(k1, (H, in1))
    w2 = xavier_normal(k2, (H, H))
    w3 = xavier_normal(k3, (1, H))
    # Biases drawn like PyTorch's default uniform(+-1/sqrt(fan_in)); stored as
    # (H, 1) so they broadcast over the lane (batch) axis in the kernel.
    b1 = jax.random.uniform(kb1, (H, 1), jnp.float32, -in1 ** -0.5, in1 ** -0.5)
    b2 = jax.random.uniform(kb2, (H, 1), jnp.float32, -H ** -0.5, H ** -0.5)
    b3 = jax.random.uniform(kb3, (1, 1), jnp.float32, -H ** -0.5, H ** -0.5)
    return (w1, b1, w2, b2, w3.T, b3)                  # w3 stored as (H, 1)


def reference_forward(z1, z2, params):
    w1, b1, w2, b2, w3t, b3 = params
    x = jnp.concatenate([z1, z2], axis=1)
    h = jnp.tanh(x @ w1.T + b1[:, 0])
    h = jnp.tanh(h @ w2.T + b2[:, 0])
    return h @ w3t + b3


if __name__ == "__main__":
    E, H = 16, 32  # embedding_size, pen_hidden
    key = jax.random.PRNGKey(0)
    kz1, kz2, kp = jax.random.split(key, 3)
    params = init_params(kp, E, H)

    # Small-shape check (single, mostly-masked tile).
    B = 2
    z1 = jax.random.normal(kz1, (B, E), dtype=jnp.float32)
    z2 = jax.random.normal(kz2, (B, E), dtype=jnp.float32)
    out = jax.block_until_ready(pen_forward(z1, z2, params))
    ref = reference_forward(z1, z2, params)
    assert out.shape == (B, 1), out.shape
    assert jnp.allclose(out, ref, atol=1e-5, rtol=1e-5), (out, ref)

    # Multi-tile check: non-multiple-of-128 batch, 3 grid steps, partial last tile.
    B2 = 300
    z1b = jax.random.normal(kz1, (B2, E), dtype=jnp.float32)
    z2b = jax.random.normal(kz2, (B2, E), dtype=jnp.float32)
    out2 = jax.block_until_ready(pen_forward(z1b, z2b, params, block_b=128))
    ref2 = reference_forward(z1b, z2b, params)
    assert out2.shape == (B2, 1), out2.shape
    assert jnp.allclose(out2, ref2, atol=1e-5, rtol=1e-5)

    # Default large-tile path through the preferred (already-transposed) entry.
    out3 = jax.block_until_ready(pen_forward_t(z1b.T, z2b.T, params))
    assert out3.shape == (B2, 1), out3.shape
    assert jnp.allclose(out3, ref2, atol=1e-5, rtol=1e-5)

    print("KERNEL_OK")
</pallas_src>

<mosaic_0001>
module attributes {stable_mosaic.version = 11 : i64} {
  func.func @pen_kernel(%arg0: i32, %arg1: memref<16x128xf32, #tpu.memory_space<vmem>>, %arg2: memref<16x128xf32, #tpu.memory_space<vmem>>, %arg3: memref<32x16xf32, #tpu.memory_space<vmem>>, %arg4: memref<32x16xf32, #tpu.memory_space<vmem>>, %arg5: memref<32x1xf32, #tpu.memory_space<vmem>>, %arg6: memref<32x32xf32, #tpu.memory_space<vmem>>, %arg7: memref<32x1xf32, #tpu.memory_space<vmem>>, %arg8: memref<32x1xf32, #tpu.memory_space<vmem>>, %arg9: memref<1x1xf32, #tpu.memory_space<smem>>, %arg10: memref<1x128xf32, #tpu.memory_space<vmem>>) attributes {dimension_semantics = [#tpu.dimension_semantics<parallel>], iteration_bounds = array<i64: 1>, scalar_prefetch = 0 : i64, scratch_operands = 0 : i64, tpu.core_type = #tpu.core_type<tc>, window_params = [{transform_indices = @transform_0, window_bounds = array<i64: 16, 128>}, {transform_indices = @transform_1, window_bounds = array<i64: 16, 128>}, {pipeline_mode = #tpu.pipeline_mode<synchronous>, transform_indices = @transform_2, window_bounds = array<i64: 32, 16>}, {pipeline_mode = #tpu.pipeline_mode<synchronous>, transform_indices = @transform_3, window_bounds = array<i64: 32, 16>}, {pipeline_mode = #tpu.pipeline_mode<synchronous>, transform_indices = @transform_4, window_bounds = array<i64: 32, 1>}, {pipeline_mode = #tpu.pipeline_mode<synchronous>, transform_indices = @transform_5, window_bounds = array<i64: 32, 32>}, {pipeline_mode = #tpu.pipeline_mode<synchronous>, transform_indices = @transform_6, window_bounds = array<i64: 32, 1>}, {pipeline_mode = #tpu.pipeline_mode<synchronous>, transform_indices = @transform_7, window_bounds = array<i64: 32, 1>}, {transform_indices = @transform_8, window_bounds = array<i64: 1, 1>}, {transform_indices = @transform_9, window_bounds = array<i64: 1, 128>}]} {
    %c0 = arith.constant 0 : index
    %c0_0 = arith.constant 0 : index
    %0 = vector.load %arg3[%c0, %c0_0] : memref<32x16xf32, #tpu.memory_space<vmem>>, vector<32x16xf32>
    %c0_1 = arith.constant 0 : index
    %c0_2 = arith.constant 0 : index
    %1 = vector.load %arg1[%c0_1, %c0_2] : memref<16x128xf32, #tpu.memory_space<vmem>>, vector<16x128xf32>
    %cst = arith.constant dense<0.000000e+00> : vector<32x128xf32>
    %2 = tpu.matmul %0, %1, %cst {dimension_numbers = #tpu.dot_dimension_numbers<[1], [0], [0], [1], [0, 0, 1, 1], [], []>} : vector<32x16xf32>, vector<16x128xf32>, vector<32x128xf32> -> vector<32x128xf32>
    %c0_3 = arith.constant 0 : index
    %c0_4 = arith.constant 0 : index
    %3 = vector.load %arg4[%c0_3, %c0_4] : memref<32x16xf32, #tpu.memory_space<vmem>>, vector<32x16xf32>
    %c0_5 = arith.constant 0 : index
    %c0_6 = arith.constant 0 : index
    %4 = vector.load %arg2[%c0_5, %c0_6] : memref<16x128xf32, #tpu.memory_space<vmem>>, vector<16x128xf32>
    %cst_7 = arith.constant dense<0.000000e+00> : vector<32x128xf32>
    %5 = tpu.matmul %3, %4, %cst_7 {dimension_numbers = #tpu.dot_dimension_numbers<[1], [0], [0], [1], [0, 0, 1, 1], [], []>} : vector<32x16xf32>, vector<16x128xf32>, vector<32x128xf32> -> vector<32x128xf32>
    %6 = arith.addf %2, %5 : vector<32x128xf32>
    %c0_8 = arith.constant 0 : index
    %c0_9 = arith.constant 0 : index
    %7 = vector.load %arg5[%c0_8, %c0_9] : memref<32x1xf32, #tpu.memory_space<vmem>>, vector<32x1xf32>
    %8 = vector.broadcast %7 : vector<32x1xf32> to vector<32x128xf32>
    %9 = arith.addf %6, %8 : vector<32x128xf32>
    %10 = math.tanh %9 : vector<32x128xf32>
    %c0_10 = arith.constant 0 : index
    %c0_11 = arith.constant 0 : index
    %11 = vector.load %arg6[%c0_10, %c0_11] : memref<32x32xf32, #tpu.memory_space<vmem>>, vector<32x32xf32>
    %cst_12 = arith.constant dense<0.000000e+00> : vector<32x128xf32>
    %12 = tpu.matmul %11, %10, %cst_12 {dimension_numbers = #tpu.dot_dimension_numbers<[1], [0], [0], [1], [0, 0, 1, 1], [], []>} : vector<32x32xf32>, vector<32x128xf32>, vector<32x128xf32> -> vector<32x128xf32>
    %c0_13 = arith.constant 0 : index
    %c0_14 = arith.constant 0 : index
    %13 = vector.load %arg7[%c0_13, %c0_14] : memref<32x1xf32, #tpu.memory_space<vmem>>, vector<32x1xf32>
    %14 = vector.broadcast %13 : vector<32x1xf32> to vector<32x128xf32>
    %15 = arith.addf %12, %14 : vector<32x128xf32>
    %16 = math.tanh %15 : vector<32x128xf32>
    %c0_15 = arith.constant 0 : index
    %c0_16 = arith.constant 0 : index
    %17 = vector.load %arg8[%c0_15, %c0_16] : memref<32x1xf32, #tpu.memory_space<vmem>>, vector<32x1xf32>
    %18 = vector.broadcast %17 : vector<32x1xf32> to vector<32x128xf32>
    %19 = arith.mulf %18, %16 : vector<32x128xf32>
    %cst_17 = arith.constant dense<0.000000e+00> : vector<128xf32>
    %20 = vector.multi_reduction <add>, %19, %cst_17 [0] : vector<32x128xf32> to vector<128xf32>
    %21 = vector.shape_cast %20 : vector<128xf32> to vector<1x128xf32>
    %c0_18 = arith.constant 0 : index
    %c0_19 = arith.constant 0 : index
    %22 = memref.load %arg9[%c0_18, %c0_19] : memref<1x1xf32, #tpu.memory_space<smem>>
    %23 = vector.broadcast %22 : f32 to vector<1x128xf32>
    %24 = arith.addf %21, %23 : vector<1x128xf32>
    %c0_20 = arith.constant 0 : index
    %c0_21 = arith.constant 0 : index
    %25 = vector.load %arg10[%c0_20, %c0_21] : memref<1x128xf32, #tpu.memory_space<vmem>>, vector<1x128xf32>
    tpu.vector_store %arg10[%c0_20, %c0_21], %24 {strides = array<i32>} : memref<1x128xf32, #tpu.memory_space<vmem>>, vector<1x128xf32>,
    return
  }
  func.func @transform_0(%arg0: i32) -> (i32, i32) {
    %c0_i32 = arith.constant 0 : i32
    %c0_i32_0 = arith.constant 0 : i32
    return %c0_i32, %arg0 : i32, i32
  }
  func.func @transform_1(%arg0: i32) -> (i32, i32) {
    %c0_i32 = arith.constant 0 : i32
    %c0_i32_0 = arith.constant 0 : i32
    return %c0_i32, %arg0 : i32, i32
  }
  func.func @transform_2(%arg0: i32) -> (i32, i32) {
    %c0_i32 = arith.constant 0 : i32
    %c0_i32_0 = arith.constant 0 : i32
    %c0_i32_1 = arith.constant 0 : i32
    return %c0_i32, %c0_i32_0 : i32, i32
  }
  func.func @transform_3(%arg0: i32) -> (i32, i32) {
    %c0_i32 = arith.constant 0 : i32
    %c0_i32_0 = arith.constant 0 : i32
    %c0_i32_1 = arith.constant 0 : i32
    return %c0_i32, %c0_i32_0 : i32, i32
  }
  func.func @transform_4(%arg0: i32) -> (i32, i32) {
    %c0_i32 = arith.constant 0 : i32
    %c0_i32_0 = arith.constant 0 : i32
    %c0_i32_1 = arith.constant 0 : i32
    return %c0_i32, %c0_i32_0 : i32, i32
  }
  func.func @transform_5(%arg0: i32) -> (i32, i32) {
    %c0_i32 = arith.constant 0 : i32
    %c0_i32_0 = arith.constant 0 : i32
    %c0_i32_1 = arith.constant 0 : i32
    return %c0_i32, %c0_i32_0 : i32, i32
  }
  func.func @transform_6(%arg0: i32) -> (i32, i32) {
    %c0_i32 = arith.constant 0 : i32
    %c0_i32_0 = arith.constant 0 : i32
    %c0_i32_1 = arith.constant 0 : i32
    return %c0_i32, %c0_i32_0 : i32, i32
  }
  func.func @transform_7(%arg0: i32) -> (i32, i32) {
    %c0_i32 = arith.constant 0 : i32
    %c0_i32_0 = arith.constant 0 : i32
    %c0_i32_1 = arith.constant 0 : i32
    return %c0_i32, %c0_i32_0 : i32, i32
  }
  func.func @transform_8(%arg0: i32) -> (i32, i32) {
    %c0_i32 = arith.constant 0 : i32
    %c0_i32_0 = arith.constant 0 : i32
    %c0_i32_1 = arith.constant 0 : i32
    return %c0_i32, %c0_i32_0 : i32, i32
  }
  func.func @transform_9(%arg0: i32) -> (i32, i32) {
    %c0_i32 = arith.constant 0 : i32
    %c0_i32_0 = arith.constant 0 : i32
    return %c0_i32, %arg0 : i32, i32
  }
}

</mosaic_0001>

<llo_original>
// kernel: tpu_custom_call.1
$region0: #{tpu_custom_call.1}
  #allocation0 [shape = 'u32[]', space=smem, size = 0x4, offset = 0x4, fixed_abs, tag = 'smem constant byte address 0x4 - core index']
  #allocation1 [shape = 'u32[72,128]{1,0:T(1,128)}', space=vmem, size = 0x9000, scoped, tag = 'internal scratch']
  #allocation2 [shape = 'f32[1,1]{1,0:T(1,128)S(6)}', space=smem, size = 0x200, scoped, tag = 'scoped memory for tpu_custom_call.1']
  %s0 = inlined_call_operand.vmem [shape: f32[16,2], index: 0, kind: input, shape index: {}]
  %s1 = inlined_call_operand.vmem [shape: f32[16,2], index: 1, kind: input, shape index: {}]
  %s2 = inlined_call_operand.vmem [shape: f32[32,16], index: 2, kind: input, shape index: {}]
  %s3 = inlined_call_operand.vmem [shape: f32[32,16], index: 3, kind: input, shape index: {}]
  %s4 = inlined_call_operand.vmem [shape: f32[32,1], index: 4, kind: input, shape index: {}]
  %s5 = inlined_call_operand.vmem [shape: f32[32,32], index: 5, kind: input, shape index: {}]
  %s6 = inlined_call_operand.vmem [shape: f32[32,1], index: 6, kind: input, shape index: {}]
  %s7 = inlined_call_operand.vmem [shape: f32[32,1], index: 7, kind: input, shape index: {}]
  %s8 = inlined_call_operand.<no memory space> [shape: f32[1,1], index: 8, kind: input, shape index: {}]
  %s9 = inlined_call_operand.hbm [shape: f32[1,2], index: 9, kind: output, shape index: {}]
  %s10 = sld [smem:[#allocation0]]
  $region46: #{tpu_custom_call.1} parent=0
    _
  %s12 = ssub.s32 1, %s10
  %s13 = scalar_select 0, %s12, %s10
  %14 = sst [smem:[#allocation2]] %s8
  $region1: #{tpu_custom_call.1} parent=0
    #allocation3 [shape = 'u8[512]{0}', space=vmem, size = 0x400, scoped, tag = 'output window, operand 0, single buffered']
    #allocation4 [shape = 's32[1]{0}', space=sflag, size = 0x4, scoped, tag = 'scoped memory for tpu_custom_call.1']
    %15 = vsyncpa [#allocation4], 0
    // Predicated region
    $region2: #{tpu_custom_call.1} parent=1 // pred_check
      _
    $region3: #{tpu_custom_call.1} parent=1 // pred_check_branch
      %17 = sbr.rel (0) target = $region5
    $region4: #{tpu_custom_call.1} parent=1 // pred_region
      _
    $region5: #{tpu_custom_call.1} parent=1 // pred_fallthru
      _
    // Predicated region
    $region6: #{tpu_custom_call.1} parent=1 // pred_check
      _
    $region7: #{tpu_custom_call.1} parent=1 // pred_check_branch
      %19 = sbr.rel (0) target = $region9
    $region8: #{tpu_custom_call.1} parent=1 // pred_region
      _
    $region9: #{tpu_custom_call.1} parent=1 // pred_fallthru
      _
    // Predicated region
    $region10: #{tpu_custom_call.1} parent=1 // pred_check
      _
    $region11: #{tpu_custom_call.1} parent=1 // pred_check_branch
      %21 = sbr.rel (0) target = $region13
    $region12: #{tpu_custom_call.1} parent=1 // pred_region
      _
    $region13: #{tpu_custom_call.1} parent=1 // pred_fallthru
      _
    // Predicated region
    $region14: #{tpu_custom_call.1} parent=1 // pred_check
      _
    $region15: #{tpu_custom_call.1} parent=1 // pred_check_branch
      %23 = sbr.rel (0) target = $region17
    $region16: #{tpu_custom_call.1} parent=1 // pred_region
      _
    $region17: #{tpu_custom_call.1} parent=1 // pred_fallthru
      _
    // Predicated region
    $region18: #{tpu_custom_call.1} parent=1 // pred_check
      _
    $region19: #{tpu_custom_call.1} parent=1 // pred_check_branch
      %25 = sbr.rel (0) target = $region21
    $region20: #{tpu_custom_call.1} parent=1 // pred_region
      _
    $region21: #{tpu_custom_call.1} parent=1 // pred_fallthru
      _
    // Predicated region
    $region22: #{tpu_custom_call.1} parent=1 // pred_check
      _
    $region23: #{tpu_custom_call.1} parent=1 // pred_check_branch
      %27 = sbr.rel (0) target = $region25
    $region24: #{tpu_custom_call.1} parent=1 // pred_region
      _
    $region25: #{tpu_custom_call.1} parent=1 // pred_fallthru
      _
    // Predicated region
    $region26: #{tpu_custom_call.1} parent=1 // pred_check
      _
    $region27: #{tpu_custom_call.1} parent=1 // pred_check_branch
      %29 = sbr.rel (0) target = $region29
    $region28: #{tpu_custom_call.1} parent=1 // pred_region
      _
    $region29: #{tpu_custom_call.1} parent=1 // pred_fallthru
      _
    // Predicated region
    $region30: #{tpu_custom_call.1} parent=1 // pred_check
      _
    $region31: #{tpu_custom_call.1} parent=1 // pred_check_branch
      %31 = sbr.rel (0) target = $region33
    $region32: #{tpu_custom_call.1} parent=1 // pred_region
      _
    $region33: #{tpu_custom_call.1} parent=1 // pred_fallthru
      _
    // Predicated region
    $region34: #{tpu_custom_call.1} parent=1 // pred_check
      _
    $region35: #{tpu_custom_call.1} parent=1 // pred_check_branch
      %33 = sbr.rel (0) target = $region37
    $region36: #{tpu_custom_call.1} parent=1 // pred_region
      _
    $region37: #{tpu_custom_call.1} parent=1 // pred_fallthru
      _
    %v34 = vld [vmem:[%s2] sm:$0xff]
    %v35 = vld [vmem:[%s2 + $0x8] sm:$0xff]
    %v36 = vld [vmem:[%s2 + $0x10] sm:$0xff]
    %v37 = vld [vmem:[%s2 + $0x18] sm:$0xff]
    %v38 = vld [vmem:[%s0] sm:$0xff]
    %v39 = vld [vmem:[%s0 + $0x8] sm:$0xff]
    %v40 = vld [vmem:[%s3] sm:$0xff]
    %v41 = vld [vmem:[%s3 + $0x8] sm:$0xff]
    %v42 = vld [vmem:[%s3 + $0x10] sm:$0xff]
    %v43 = vld [vmem:[%s3 + $0x18] sm:$0xff]
    %v44 = vld [vmem:[%s1] sm:$0xff]
    %v45 = vld [vmem:[%s1 + $0x8] sm:$0xff]
    %vm46 = vcmask 130048
    %v48 = vsel %vm46, %v40, 0
    %v51 = vsel %vm46, %v41, 0
    %v54 = vsel %vm46, %v42, 0
    %v57 = vsel %vm46, %v43, 0
    %59 = vmatpush.msra.mxu0 0.0
    %60 = vmatpush.msra.mxu0 0.0
    %61 = vmatpush.msra.mxu0 0.0
    %62 = vmatpush.msra.mxu0 0.0
    %63 = vmatpush.msra.mxu0 0.0
    %64 = vmatpush.msra.mxu0 0.0
    %65 = vmatpush.msra.mxu0 0.0
    %66 = vmatpush.msra.mxu0 0.0
    %67 = vmatpush.msra.mxu0 0.0
    %68 = vmatpush.msra.mxu0 0.0
    %69 = vmatpush.msra.mxu0 0.0
    %70 = vmatpush.msra.mxu0 0.0
    %71 = vmatpush.msra.mxu0 0.0
    %72 = vmatpush.msra.mxu0 0.0
    %73 = vmatpush.msra.mxu0 %v45
    %74 = vmatpush.msra.mxu0 %v44
    %75 = vmatmul.f32.gmra.mxu0 %v48
    %v76 = vpop.f32.mrf.mxu0
    %v77 = vadd.f32 0.0, %v76
    %78 = vmatmul.f32.gmra.mxu0 %v51
    %v79 = vpop.f32.mrf.mxu0
    %v80 = vadd.f32 0.0, %v79
    %81 = vmatmul.f32.gmra.mxu0 %v54
    %v82 = vpop.f32.mrf.mxu0
    %v83 = vadd.f32 0.0, %v82
    %84 = vmatmul.f32.gmra.mxu0 %v57
    %v85 = vpop.f32.mrf.mxu0
    %v86 = vadd.f32 0.0, %v85
    %87 = vdwg.mxu0
    %v89 = vsel %vm46, %v34, 0
    %v92 = vsel %vm46, %v35, 0
    %v95 = vsel %vm46, %v36, 0
    %v98 = vsel %vm46, %v37, 0
    %100 = vmatpush.msra.mxu0 0.0
    %101 = vmatpush.msra.mxu0 0.0
    %102 = vmatpush.msra.mxu0 0.0
    %103 = vmatpush.msra.mxu0 0.0
    %104 = vmatpush.msra.mxu0 0.0
    %105 = vmatpush.msra.mxu0 0.0
    %106 = vmatpush.msra.mxu0 0.0
    %107 = vmatpush.msra.mxu0 0.0
    %108 = vmatpush.msra.mxu0 0.0
    %109 = vmatpush.msra.mxu0 0.0
    %110 = vmatpush.msra.mxu0 0.0
    %111 = vmatpush.msra.mxu0 0.0
    %112 = vmatpush.msra.mxu0 0.0
    %113 = vmatpush.msra.mxu0 0.0
    %114 = vmatpush.msra.mxu0 %v39
    %115 = vmatpush.msra.mxu0 %v38
    %116 = vmatmul.f32.gmra.mxu0 %v89
    %v117 = vpop.f32.mrf.mxu0
    %v118 = vadd.f32 %v77, %v117
    %119 = vmatmul.f32.gmra.mxu0 %v92
    %v120 = vpop.f32.mrf.mxu0
    %v121 = vadd.f32 %v80, %v120
    %122 = vmatmul.f32.gmra.mxu0 %v95
    %v123 = vpop.f32.mrf.mxu0
    %v124 = vadd.f32 %v83, %v123
    %125 = vmatmul.f32.gmra.mxu0 %v98
    %v126 = vpop.f32.mrf.mxu0
    %v127 = vadd.f32 %v86, %v126
    %128 = vdwg.mxu0
    %v129 = vld [vmem:[%s4] sm:$0xff]
    %v130 = vld [vmem:[%s4 + $0x8] sm:$0xff]
    %v131 = vld [vmem:[%s4 + $0x10] sm:$0xff]
    %v132 = vld [vmem:[%s4 + $0x18] sm:$0xff]
    %134 = vset.pattern.permute.xlu0 0
    %135 = vperm.xlu0 %134, %v129
    %v136 = vpop.permute.xlu0 %135
    %139 = vset.pattern.permute.xlu0 0
    %140 = vperm.xlu0 %139, %v130
    %v141 = vpop.permute.xlu0 %140
    %144 = vset.pattern.permute.xlu0 0
    %145 = vperm.xlu0 %144, %v131
    %v146 = vpop.permute.xlu0 %145
    %149 = vset.pattern.permute.xlu0 0
    %150 = vperm.xlu0 %149, %v132
    %v151 = vpop.permute.xlu0 %150
    %v153 = vadd.f32 %v118, %v136
    %v154 = vadd.f32 %v121, %v141
    %v155 = vadd.f32 %v124, %v146
    %v156 = vadd.f32 %v127, %v151
    %v157 = vtanh.pop %v153
    %v158 = vtanh.pop %v154
    %v159 = vtanh.pop %v155
    %v160 = vtanh.pop %v156
    %v161 = vld [vmem:[%s5] sm:$0xff]
    %v162 = vld [vmem:[%s5 + $0x8] sm:$0xff]
    %v163 = vld [vmem:[%s5 + $0x10] sm:$0xff]
    %v164 = vld [vmem:[%s5 + $0x18] sm:$0xff]
    %v165 = vld [vmem:[%s6] sm:$0xff]
    %v166 = vld [vmem:[%s6 + $0x8] sm:$0xff]
    %v167 = vld [vmem:[%s6 + $0x10] sm:$0xff]
    %v168 = vld [vmem:[%s6 + $0x18] sm:$0xff]
    %170 = vset.pattern.permute.xlu0 0
    %171 = vperm.xlu0 %170, %v165
    %v172 = vpop.permute.xlu0 %171
    %175 = vset.pattern.permute.xlu0 0
    %176 = vperm.xlu0 %175, %v166
    %v177 = vpop.permute.xlu0 %176
    %180 = vset.pattern.permute.xlu0 0
    %181 = vperm.xlu0 %180, %v167
    %v182 = vpop.permute.xlu0 %181
    %185 = vset.pattern.permute.xlu0 0
    %186 = vperm.xlu0 %185, %v168
    %v187 = vpop.permute.xlu0 %186
    %vm189 = vcmask 261120
    %v191 = vsel %vm189, %v161, 0
    %v194 = vsel %vm189, %v162, 0
    %v197 = vsel %vm189, %v163, 0
    %v200 = vsel %vm189, %v164, 0
    %202 = vmatpush.msra.mxu0 0.0
    %203 = vmatpush.msra.mxu0 0.0
    %204 = vmatpush.msra.mxu0 0.0
    %205 = vmatpush.msra.mxu0 0.0
    %206 = vmatpush.msra.mxu0 0.0
    %207 = vmatpush.msra.mxu0 0.0
    %208 = vmatpush.msra.mxu0 0.0
    %209 = vmatpush.msra.mxu0 0.0
    %210 = vmatpush.msra.mxu0 0.0
    %211 = vmatpush.msra.mxu0 0.0
    %212 = vmatpush.msra.mxu0 0.0
    %213 = vmatpush.msra.mxu0 0.0
    %214 = vmatpush.msra.mxu0 %v160
    %215 = vmatpush.msra.mxu0 %v159
    %216 = vmatpush.msra.mxu0 %v158
    %217 = vmatpush.msra.mxu0 %v157
    %218 = vmatmul.f32.gmra.mxu0 %v191
    %v219 = vpop.f32.mrf.mxu0
    %v220 = vadd.f32 %v172, %v219
    %221 = vmatmul.f32.gmra.mxu0 %v194
    %v222 = vpop.f32.mrf.mxu0
    %v223 = vadd.f32 %v177, %v222
    %224 = vmatmul.f32.gmra.mxu0 %v197
    %v225 = vpop.f32.mrf.mxu0
    %v226 = vadd.f32 %v182, %v225
    %227 = vmatmul.f32.gmra.mxu0 %v200
    %v228 = vpop.f32.mrf.mxu0
    %v229 = vadd.f32 %v187, %v228
    %230 = vdwg.mxu0
    %v231 = vtanh.pop %v220
    %v232 = vtanh.pop %v223
    %v233 = vtanh.pop %v226
    %v234 = vtanh.pop %v229
    %v235 = vld [vmem:[%s7] sm:$0xff]
    %v236 = vld [vmem:[%s7 + $0x8] sm:$0xff]
    %v237 = vld [vmem:[%s7 + $0x10] sm:$0xff]
    %v238 = vld [vmem:[%s7 + $0x18] sm:$0xff]
    %240 = vset.pattern.permute.xlu0 0
    %241 = vperm.xlu0 %240, %v235
    %v242 = vpop.permute.xlu0 %241
    %245 = vset.pattern.permute.xlu0 0
    %246 = vperm.xlu0 %245, %v236
    %v247 = vpop.permute.xlu0 %246
    %250 = vset.pattern.permute.xlu0 0
    %251 = vperm.xlu0 %250, %v237
    %v252 = vpop.permute.xlu0 %251
    %255 = vset.pattern.permute.xlu0 0
    %256 = vperm.xlu0 %255, %v238
    %v257 = vpop.permute.xlu0 %256
    %v259 = vmul.f32 %v242, %v231
    %v260 = vmul.f32 %v247, %v232
    %v261 = vmul.f32 %v252, %v233
    %v262 = vmul.f32 %v257, %v234
    %v263 = vadd.f32 %v259, %v260
    %v264 = vadd.f32 %v263, %v261
    %v265 = vadd.f32 %v264, %v262
    %v266 = vrot.slane %v265, 4
    %v267 = vadd.f32 %v265, %v266
    %v268 = vrot.slane %v267, 2
    %v269 = vadd.f32 %v267, %v268
    %v270 = vrot.slane %v269, 1
    %v271 = vadd.f32 %v269, %v270
    %s272 = sld [smem:[#allocation2]]
    %v273 = vstv %s272
    %v274 = vadd.f32 %v271, %v273
    %275 = vst [vmem:[#allocation3] sm:$0x1] %v274
    // Predicated region
    $region38: #{tpu_custom_call.1} parent=1 // pred_check
      _
    $region39: #{tpu_custom_call.1} parent=1 // pred_check_branch
      %277 = sbr.rel (0) target = $region41
    $region40: #{tpu_custom_call.1} parent=1 // pred_region
      %279 = vsyncadd [#allocation4], 0
      %s281 = sshll.u32 [#allocation3], 4
      %s282 = int_to_ptr.vmem [resolvable:$true] %s281
      %s283 = sshll.u32 %s9, 4
      %s284 = int_to_ptr.hbm [resolvable:$true] %s283
      %286 = dma.vmem_to_hbm [thread:$0]  %s282, 16, %s284, [#allocation4]
    $region41: #{tpu_custom_call.1} parent=1 // pred_fallthru
      _
    // Predicated region
    $region42: #{tpu_custom_call.1} parent=1 // pred_check
      _
    $region43: #{tpu_custom_call.1} parent=1 // pred_check_branch
      %288 = sbr.rel (0) target = $region45
    $region44: #{tpu_custom_call.1} parent=1 // pred_region
      %290 = dma.done [#allocation4], 16
    $region45: #{tpu_custom_call.1} parent=1 // pred_fallthru
      _
    %291 = vsyncpa [#allocation4], 1

</llo_original>
